<compile_context>
chip_gen: v7x
topology: tpu7x:2x2x1
jax: 0.10.0
libtpu: 0.0.40
codegen_flags: <defaults>
</compile_context>

<pallas_src>
import functools
import math

import jax
import jax.numpy as jnp
from jax.experimental import pallas as pl
from jax.experimental.pallas import tpu as pltpu

_GROUP = 8  # rows gathered per inner-loop iteration (statically unrolled)


def _round_up(x, m):
    return (x + m - 1) // m * m


def _embedding_gather_kernel(ids_ref, table_ref, out_ref, *, scale):
    # ids_ref:   (n_tok_padded,) int32 in SMEM (scalar-prefetched)
    # table_ref: (vocab, d_model) in VMEM (constant block index -> fetched once)
    # out_ref:   (token_tile, d_model) in VMEM
    token_tile = out_ref.shape[0]
    base = pl.program_id(0) * token_tile

    def copy_group(g, carry):
        # 8 statically-unrolled, independent row copies per iteration gives the
        # scheduler room to interleave the VMEM loads/stores.
        row = pl.multiple_of(g * _GROUP, _GROUP)
        for r in range(_GROUP):
            t = row + r
            idx = ids_ref[base + t]
            out_ref[pl.ds(t, 1), :] = table_ref[pl.ds(idx, 1), :]
        return carry

    jax.lax.fori_loop(0, token_tile // _GROUP, copy_group, 0, unroll=False)

    # One vectorized VPU pass for the sqrt(d_model) scale.
    out_ref[...] = (out_ref[...] * scale).astype(out_ref.dtype)


def embeddings_forward(ids, table, d_model, *, token_tile=256):
    """ids: (batch, seq) int32 in [0, vocab); table: (vocab, d_model).

    Returns (batch, seq, d_model) = table[ids] * sqrt(d_model).
    """
    batch, seq = ids.shape
    vocab, d = table.shape
    assert d == d_model
    n_tok = batch * seq

    # Tile sizing: large tiles amortize per-grid-step overhead; keep the tile a
    # multiple of 8 (sublane / _GROUP), and keep >= 2 grid steps when possible
    # so the "parallel" axis can shard across v7x's two TensorCores.
    tile = max(_GROUP, min(token_tile, _round_up(n_tok, _GROUP)))
    tile = _round_up(tile, _GROUP)
    if _round_up(n_tok, tile) // tile < 2 and n_tok >= 2 * _GROUP:
        tile = max(_GROUP, _round_up(pl.cdiv(n_tok, 2), _GROUP))
    n_pad = _round_up(n_tok, tile)
    grid = n_pad // tile

    ids_flat = ids.reshape(-1).astype(jnp.int32)
    if n_pad != n_tok:
        ids_flat = jnp.concatenate(
            [ids_flat, jnp.zeros((n_pad - n_tok,), jnp.int32)])

    # Explicit VMEM budget: table (the pipeline still allocates double buffers
    # even though its block index is constant) + double-buffered output tile
    # + slack.  Keeps us safely under v7x's 64 MiB / default scoped limits.
    itemsize = jnp.dtype(table.dtype).itemsize
    vmem_need = (2 * vocab * d_model * itemsize
                 + 2 * tile * d_model * itemsize
                 + (1 << 20))
    # TODO(synk): for tables that don't fit VMEM (> ~20 MiB, esp. on v7x), keep
    # the table in HBM (memory_space=pl.ANY) and gather rows via manual DMAs.
    assert vmem_need <= 48 * 2**20, "embedding table too large for VMEM-resident gather"

    kernel = functools.partial(_embedding_gather_kernel, scale=math.sqrt(d_model))

    out_flat = pl.pallas_call(
        kernel,
        out_shape=jax.ShapeDtypeStruct((n_pad, d_model), table.dtype),
        grid_spec=pltpu.PrefetchScalarGridSpec(
            num_scalar_prefetch=1,                         # ids -> SMEM
            grid=(grid,),
            in_specs=[
                # Full table resident in VMEM; constant block index so it is
                # only DMA'd once (re-used across all grid steps).
                pl.BlockSpec((vocab, d_model), lambda i, ids: (0, 0)),
            ],
            out_specs=pl.BlockSpec((tile, d_model), lambda i, ids: (i, 0)),
        ),
        compiler_params=pltpu.CompilerParams(
            dimension_semantics=("parallel",),
            vmem_limit_bytes=int(max(vmem_need, 16 * 2**20)),
        ),
    )(ids_flat, table)

    return out_flat[:n_tok].reshape(batch, seq, d_model)


if __name__ == "__main__":
    key = jax.random.PRNGKey(0)

    # Config 1: toy shapes consistent with the module (batch=2, seq=8).
    # Config 2: moderately larger config exercising full 256-token tiles and a
    #           multi-step grid (still small: 512 KiB table).
    configs = [
        dict(vocab=64, d_model=32, batch=2, seq=8),
        dict(vocab=1024, d_model=128, batch=4, seq=128),
    ]

    for cfg in configs:
        key, k_w, k_ids = jax.random.split(key, 3)
        table = jax.random.normal(
            k_w, (cfg["vocab"], cfg["d_model"]), dtype=jnp.float32)
        ids = jax.random.randint(
            k_ids, (cfg["batch"], cfg["seq"]), 0, cfg["vocab"], dtype=jnp.int32)

        out = embeddings_forward(ids, table, cfg["d_model"])
        out = jax.block_until_ready(out)

        # Reference: lut(x) * sqrt(d_model) in plain JAX.
        ref = table[ids] * math.sqrt(cfg["d_model"])
        assert out.shape == (cfg["batch"], cfg["seq"], cfg["d_model"])
        assert jnp.allclose(out, ref, atol=1e-5, rtol=1e-5), cfg

    print("KERNEL_OK")
</pallas_src>

<mosaic_0001>
module attributes {stable_mosaic.version = 11 : i64} {
  func.func @_embedding_gather_kernel(%arg0: i32, %arg1: memref<16xi32, #tpu.memory_space<smem>>, %arg2: memref<64x32xf32, #tpu.memory_space<vmem>>, %arg3: memref<8x32xf32, #tpu.memory_space<vmem>>) attributes {dimension_semantics = [#tpu.dimension_semantics<parallel>], iteration_bounds = array<i64: 2>, scalar_prefetch = 1 : i64, scratch_operands = 0 : i64, tpu.core_type = #tpu.core_type<tc>, window_params = [{pipeline_mode = #tpu.pipeline_mode<synchronous>, transform_indices = @transform_0, window_bounds = array<i64: 64, 32>}, {transform_indices = @transform_1, window_bounds = array<i64: 8, 32>}]} {
    %c8_i32 = arith.constant 8 : i32
    %0 = arith.muli %arg0, %c8_i32 : i32
    %c0_i32 = arith.constant 0 : i32
    %c8_i32_0 = arith.constant 8 : i32
    %1 = arith.muli %c0_i32, %c8_i32_0 : i32
    %2 = tpu.assume_multiple %1, 8 : i32
    %c0_i32_1 = arith.constant 0 : i32
    %3 = arith.addi %2, %c0_i32_1 : i32
    %4 = arith.addi %0, %3 : i32
    %5 = arith.index_cast %4 : i32 to index
    %6 = memref.load %arg1[%5] : memref<16xi32, #tpu.memory_space<smem>>
    %7 = arith.index_cast %6 : i32 to index
    %c0 = arith.constant 0 : index
    %8 = vector.load %arg2[%7, %c0] : memref<64x32xf32, #tpu.memory_space<vmem>>, vector<1x32xf32>
    %9 = arith.index_cast %3 : i32 to index
    %c0_2 = arith.constant 0 : index
    %10 = vector.load %arg3[%9, %c0_2] : memref<8x32xf32, #tpu.memory_space<vmem>>, vector<1x32xf32>
    tpu.vector_store %arg3[%9, %c0_2], %8 {strides = array<i32>} : memref<8x32xf32, #tpu.memory_space<vmem>>, vector<1x32xf32>,
    %c1_i32 = arith.constant 1 : i32
    %11 = arith.addi %2, %c1_i32 : i32
    %12 = arith.addi %0, %11 : i32
    %13 = arith.index_cast %12 : i32 to index
    %14 = memref.load %arg1[%13] : memref<16xi32, #tpu.memory_space<smem>>
    %15 = arith.index_cast %14 : i32 to index
    %c0_3 = arith.constant 0 : index
    %16 = vector.load %arg2[%15, %c0_3] : memref<64x32xf32, #tpu.memory_space<vmem>>, vector<1x32xf32>
    %17 = arith.index_cast %11 : i32 to index
    %c0_4 = arith.constant 0 : index
    %18 = vector.load %arg3[%17, %c0_4] : memref<8x32xf32, #tpu.memory_space<vmem>>, vector<1x32xf32>
    tpu.vector_store %arg3[%17, %c0_4], %16 {strides = array<i32>} : memref<8x32xf32, #tpu.memory_space<vmem>>, vector<1x32xf32>,
    %c2_i32 = arith.constant 2 : i32
    %19 = arith.addi %2, %c2_i32 : i32
    %20 = arith.addi %0, %19 : i32
    %21 = arith.index_cast %20 : i32 to index
    %22 = memref.load %arg1[%21] : memref<16xi32, #tpu.memory_space<smem>>
    %23 = arith.index_cast %22 : i32 to index
    %c0_5 = arith.constant 0 : index
    %24 = vector.load %arg2[%23, %c0_5] : memref<64x32xf32, #tpu.memory_space<vmem>>, vector<1x32xf32>
    %25 = arith.index_cast %19 : i32 to index
    %c0_6 = arith.constant 0 : index
    %26 = vector.load %arg3[%25, %c0_6] : memref<8x32xf32, #tpu.memory_space<vmem>>, vector<1x32xf32>
    tpu.vector_store %arg3[%25, %c0_6], %24 {strides = array<i32>} : memref<8x32xf32, #tpu.memory_space<vmem>>, vector<1x32xf32>,
    %c3_i32 = arith.constant 3 : i32
    %27 = arith.addi %2, %c3_i32 : i32
    %28 = arith.addi %0, %27 : i32
    %29 = arith.index_cast %28 : i32 to index
    %30 = memref.load %arg1[%29] : memref<16xi32, #tpu.memory_space<smem>>
    %31 = arith.index_cast %30 : i32 to index
    %c0_7 = arith.constant 0 : index
    %32 = vector.load %arg2[%31, %c0_7] : memref<64x32xf32, #tpu.memory_space<vmem>>, vector<1x32xf32>
    %33 = arith.index_cast %27 : i32 to index
    %c0_8 = arith.constant 0 : index
    %34 = vector.load %arg3[%33, %c0_8] : memref<8x32xf32, #tpu.memory_space<vmem>>, vector<1x32xf32>
    tpu.vector_store %arg3[%33, %c0_8], %32 {strides = array<i32>} : memref<8x32xf32, #tpu.memory_space<vmem>>, vector<1x32xf32>,
    %c4_i32 = arith.constant 4 : i32
    %35 = arith.addi %2, %c4_i32 : i32
    %36 = arith.addi %0, %35 : i32
    %37 = arith.index_cast %36 : i32 to index
    %38 = memref.load %arg1[%37] : memref<16xi32, #tpu.memory_space<smem>>
    %39 = arith.index_cast %38 : i32 to index
    %c0_9 = arith.constant 0 : index
    %40 = vector.load %arg2[%39, %c0_9] : memref<64x32xf32, #tpu.memory_space<vmem>>, vector<1x32xf32>
    %41 = arith.index_cast %35 : i32 to index
    %c0_10 = arith.constant 0 : index
    %42 = vector.load %arg3[%41, %c0_10] : memref<8x32xf32, #tpu.memory_space<vmem>>, vector<1x32xf32>
    tpu.vector_store %arg3[%41, %c0_10], %40 {strides = array<i32>} : memref<8x32xf32, #tpu.memory_space<vmem>>, vector<1x32xf32>,
    %c5_i32 = arith.constant 5 : i32
    %43 = arith.addi %2, %c5_i32 : i32
    %44 = arith.addi %0, %43 : i32
    %45 = arith.index_cast %44 : i32 to index
    %46 = memref.load %arg1[%45] : memref<16xi32, #tpu.memory_space<smem>>
    %47 = arith.index_cast %46 : i32 to index
    %c0_11 = arith.constant 0 : index
    %48 = vector.load %arg2[%47, %c0_11] : memref<64x32xf32, #tpu.memory_space<vmem>>, vector<1x32xf32>
    %49 = arith.index_cast %43 : i32 to index
    %c0_12 = arith.constant 0 : index
    %50 = vector.load %arg3[%49, %c0_12] : memref<8x32xf32, #tpu.memory_space<vmem>>, vector<1x32xf32>
    tpu.vector_store %arg3[%49, %c0_12], %48 {strides = array<i32>} : memref<8x32xf32, #tpu.memory_space<vmem>>, vector<1x32xf32>,
    %c6_i32 = arith.constant 6 : i32
    %51 = arith.addi %2, %c6_i32 : i32
    %52 = arith.addi %0, %51 : i32
    %53 = arith.index_cast %52 : i32 to index
    %54 = memref.load %arg1[%53] : memref<16xi32, #tpu.memory_space<smem>>
    %55 = arith.index_cast %54 : i32 to index
    %c0_13 = arith.constant 0 : index
    %56 = vector.load %arg2[%55, %c0_13] : memref<64x32xf32, #tpu.memory_space<vmem>>, vector<1x32xf32>
    %57 = arith.index_cast %51 : i32 to index
    %c0_14 = arith.constant 0 : index
    %58 = vector.load %arg3[%57, %c0_14] : memref<8x32xf32, #tpu.memory_space<vmem>>, vector<1x32xf32>
    tpu.vector_store %arg3[%57, %c0_14], %56 {strides = array<i32>} : memref<8x32xf32, #tpu.memory_space<vmem>>, vector<1x32xf32>,
    %c7_i32 = arith.constant 7 : i32
    %59 = arith.addi %2, %c7_i32 : i32
    %60 = arith.addi %0, %59 : i32
    %61 = arith.index_cast %60 : i32 to index
    %62 = memref.load %arg1[%61] : memref<16xi32, #tpu.memory_space<smem>>
    %63 = arith.index_cast %62 : i32 to index
    %c0_15 = arith.constant 0 : index
    %64 = vector.load %arg2[%63, %c0_15] : memref<64x32xf32, #tpu.memory_space<vmem>>, vector<1x32xf32>
    %65 = arith.index_cast %59 : i32 to index
    %c0_16 = arith.constant 0 : index
    %66 = vector.load %arg3[%65, %c0_16] : memref<8x32xf32, #tpu.memory_space<vmem>>, vector<1x32xf32>
    tpu.vector_store %arg3[%65, %c0_16], %64 {strides = array<i32>} : memref<8x32xf32, #tpu.memory_space<vmem>>, vector<1x32xf32>,
    %c1_i32_17 = arith.constant 1 : i32
    %c0_18 = arith.constant 0 : index
    %c0_19 = arith.constant 0 : index
    %67 = vector.load %arg3[%c0_18, %c0_19] : memref<8x32xf32, #tpu.memory_space<vmem>>, vector<8x32xf32>
    %cst = arith.constant 5.65685415 : f32
    %68 = vector.broadcast %cst : f32 to vector<8x32xf32>
    %69 = arith.mulf %67, %68 : vector<8x32xf32>
    %c0_20 = arith.constant 0 : index
    %c0_21 = arith.constant 0 : index
    %70 = vector.load %arg3[%c0_20, %c0_21] : memref<8x32xf32, #tpu.memory_space<vmem>>, vector<8x32xf32>
    tpu.vector_store %arg3[%c0_20, %c0_21], %69 {strides = array<i32>} : memref<8x32xf32, #tpu.memory_space<vmem>>, vector<8x32xf32>,
    return
  }
  func.func @transform_0(%arg0: i32, %arg1: memref<16xi32, #tpu.memory_space<smem>>) -> (i32, i32) {
    %c0_i32 = arith.constant 0 : i32
    %c0_i32_0 = arith.constant 0 : i32
    %c0_i32_1 = arith.constant 0 : i32
    return %c0_i32, %c0_i32_0 : i32, i32
  }
  func.func @transform_1(%arg0: i32, %arg1: memref<16xi32, #tpu.memory_space<smem>>) -> (i32, i32) {
    %c0_i32 = arith.constant 0 : i32
    %c0_i32_0 = arith.constant 0 : i32
    return %arg0, %c0_i32 : i32, i32
  }
}

</mosaic_0001>

<llo_original>
// kernel: tpu_custom_call.1
$region0: #{tpu_custom_call.1}
  #allocation0 [shape = 'u32[]', space=smem, size = 0x4, offset = 0x4, fixed_abs, tag = 'smem constant byte address 0x4 - core index']
  #allocation1 [shape = 'u32[144,128]{1,0:T(1,128)}', space=vmem, size = 0x12000, scoped, tag = 'internal scratch']
  #allocation2 [shape = 's32[1]{0}', space=sflag, size = 0x4, scoped, tag = 'scoped memory for tpu_custom_call.1']
  #allocation3 [shape = 'u8[512]{0}', space=smem, size = 0x200, scoped, tag = 'prefetched SMEM operand 0']
  %s0 = inlined_call_operand.vmem [shape: s32[16], index: 0, kind: input, shape index: {}]
  %s1 = inlined_call_operand.vmem [shape: f32[64,32], index: 1, kind: input, shape index: {}]
  %s2 = inlined_call_operand.hbm [shape: f32[16,32], index: 2, kind: output, shape index: {}]
  %s3 = sld [smem:[#allocation0]]
  $region37: #{tpu_custom_call.1} parent=0
    _
  %s5 = ssub.s32 1, %s3
  %s6 = scalar_select 0, %s5, %s3
  %s7 = sshll.u32 %s0, 4
  %s8 = int_to_ptr.vmem [resolvable:$true] %s7
  %10 = dma.vmem_to_smem %s8, 16, [#allocation3], [#allocation2]
  %11 = dma.done [#allocation2], 16
  %12 = sfence
  $region1: #{tpu_custom_call.1} parent=0
    #allocation4 [shape = 'u8[8192]{0}', space=vmem, size = 0x2000, scoped, tag = 'output window, operand 0']
    #allocation5 [shape = 's32[2]{0}', space=sflag, size = 0x8, scoped, tag = 'scoped memory for tpu_custom_call.1']
    %13 = vsyncpa [#allocation5], 0
    %s14 = scalar_lea.sflag [#allocation5], 1
    %15 = vsyncpa %s14, 0
    loop: start=0, step=1, limit=4
    $region2: #{tpu_custom_call.1} parent=1 // loop_pre_header
      _
    $region3: #{tpu_custom_call.1} parent=1 // loop_header
      %s17 = sphi 0, %s21
      %p18 = scmp.ge.s32.totalorder %s17, 4
      %s25 = sphi 0, %s25
      %s27 = sphi 0, %s25
      %s28 = sphi 0, %s27
      %s42 = sphi 0, %s28
      %s48 = sphi 0, %s50
      %s51 = sphi 0, %s48
      %s52 = sphi 0, %s51
      %s68 = sphi 0, %s52
    $region4: #{tpu_custom_call.1} parent=1 // loop_header_branch
      %20 = sbr.rel (%p18) target = $region8
    $region5: #{tpu_custom_call.1} parent=1 // loop_body
      %s22 = ssub.s32 %s17, 1
      %s23 = ssub.s32 %s17, 2
      %s24 = sadd.s32 %s17, 1
      %s26 = sadd.s32 %s25, 1
      %p29 = scmp.eq.s32.totalorder %s17, 1
      %p30 = scmp.ne.s32.totalorder %s25, %s27
      %p31 = scmp.eq.s32.totalorder %s17, 0
      %p32 = por %p30, %p31
      %p33 = scmp.ne.s32.totalorder %s25, %s27
      %p34 = scmp.eq.s32.totalorder %s22, 1
      %p35 = por %p33, %p34
      %p36 = scmp.ne.s32.totalorder %s27, %s28
      %p37 = scmp.eq.s32.totalorder %s22, 0
      %p38 = por %p36, %p37
      %p39 = scmp.ne.s32.totalorder %s27, %s28
      %p40 = scmp.eq.s32.totalorder %s23, 1
      %p41 = por %p39, %p40
      %p43 = scmp.ne.s32.totalorder %s28, %s42
      %p44 = scmp.eq.s32.totalorder %s23, 0
      %p45 = por %p43, %p44
      %s46 = ssub.s32 %s17, %s24
      %p47 = scmp.eq.s32.totalorder %s46, 0
      %s49 = sadd.s32 %s48, 1
      %s50 = scalar_select %p47, %s48, %s49
      %p53 = pneg %p47
      %p54 = scmp.eq.s32.totalorder %s17, 1
      %p55 = por %p53, %p54
      %p56 = scmp.ne.s32.totalorder %s48, %s51
      %p57 = scmp.eq.s32.totalorder %s17, 0
      %p58 = por %p56, %p57
      %p59 = scmp.ne.s32.totalorder %s48, %s51
      %p60 = scmp.eq.s32.totalorder %s22, 1
      %p61 = por %p59, %p60
      %p62 = scmp.ne.s32.totalorder %s51, %s52
      %p63 = scmp.eq.s32.totalorder %s22, 0
      %p64 = por %p62, %p63
      %p65 = scmp.ne.s32.totalorder %s51, %s52
      %p66 = scmp.eq.s32.totalorder %s23, 1
      %p67 = por %p65, %p66
      %p69 = scmp.ne.s32.totalorder %s52, %s68
      %p70 = scmp.eq.s32.totalorder %s23, 0
      %p71 = por %p69, %p70
      %p72 = scmp.le.s32.totalorder 1, %s17
      %p73 = scmp.lt.s32.totalorder %s17, 3
      %p74 = pnand %p72, %p73
      %p75 = pneg %p74
      // Predicated region
      $region9: #{tpu_custom_call.1} parent=5 // pred_check
        _
      $region10: #{tpu_custom_call.1} parent=5 // pred_check_branch
        %77 = sbr.rel (%p74) target = $region12
      $region11: #{tpu_custom_call.1} parent=5 // pred_region
        %s78 = ssub.s32 %s17, 1
        // Predicated region
        $region13: #{tpu_custom_call.1} parent=11 // pred_check
          %p79 = pneg %p38
        $region14: #{tpu_custom_call.1} parent=11 // pred_check_branch
          %81 = sbr.rel (%p79) target = $region16
        $region15: #{tpu_custom_call.1} parent=11 // pred_region
          _
        $region16: #{tpu_custom_call.1} parent=11 // pred_fallthru
          _
      $region12: #{tpu_custom_call.1} parent=5 // pred_fallthru
        _
      %p82 = scmp.lt.s32.totalorder %s17, 2
      // Predicated region
      $region17: #{tpu_custom_call.1} parent=5 // pred_check
        %p83 = pneg %p82
      $region18: #{tpu_custom_call.1} parent=5 // pred_check_branch
        %85 = sbr.rel (%p83) target = $region20
      $region19: #{tpu_custom_call.1} parent=5 // pred_region
        _
      $region20: #{tpu_custom_call.1} parent=5 // pred_fallthru
        _
      %p86 = scmp.le.s32.totalorder 1, %s17
      %p87 = scmp.lt.s32.totalorder %s17, 3
      %p88 = pnand %p86, %p87
      %p89 = pneg %p88
      // Predicated region
      $region21: #{tpu_custom_call.1} parent=5 // pred_check
        _
      $region22: #{tpu_custom_call.1} parent=5 // pred_check_branch
        %91 = sbr.rel (%p88) target = $region24
      $region23: #{tpu_custom_call.1} parent=5 // pred_region
        %s92 = ssub.s32 %s17, 1
        %p93 = pneg %p38
        %p94 = pneg %p35
        %p95 = pneg %p64
        %p96 = pneg %p61
        %s97 = sand.u32 %s51, 1
        %s98 = scalar_lea.sflag [#allocation5], %s97
        %s99 = sand.u32 %s51, 1
        %s100 = smul.addr %s99, 8
        %s101 = scalar_lea.vmem [#allocation4], %s100
        %s102 = smul.u32 %s22, 8
        %s103 = sadd.s32 %s102, 0
        %s104 = sld [smem:[#allocation3 + %s103]]
        %s105 = scalar_lea.vmem %s1, %s104
        %v106 = vld [vmem:[%s105] sm:$0x1]
        %vm107 = vcmask 253952
        %108 = vst.msk [vmem:[%s101] sm:$0x1] %vm107, %v106
        %s109 = sadd.s32 0, 1
        %s110 = sadd.s32 %s102, %s109
        %s111 = sld [smem:[#allocation3 + %s110]]
        %s112 = scalar_lea.vmem %s1, %s111
        %v113 = vld [vmem:[%s112] sm:$0x1]
        %s114 = scalar_lea.vmem %s101, %s109 [#allocation4]
        %115 = vst.msk [vmem:[%s114] sm:$0x1] %vm107, %v113
        %s116 = sadd.s32 0, 2
        %s117 = sadd.s32 %s102, %s116
        %s118 = sld [smem:[#allocation3 + %s117]]
        %s119 = scalar_lea.vmem %s1, %s118
        %v120 = vld [vmem:[%s119] sm:$0x1]
        %s121 = scalar_lea.vmem %s101, %s116 [#allocation4]
        %122 = vst.msk [vmem:[%s121] sm:$0x1] %vm107, %v120
        %s123 = sadd.s32 0, 3
        %s124 = sadd.s32 %s102, %s123
        %s125 = sld [smem:[#allocation3 + %s124]]
        %s126 = scalar_lea.vmem %s1, %s125
        %v127 = vld [vmem:[%s126] sm:$0x1]
        %s128 = scalar_lea.vmem %s101, %s123 [#allocation4]
        %129 = vst.msk [vmem:[%s128] sm:$0x1] %vm107, %v127
        %s130 = sadd.s32 0, 4
        %s131 = sadd.s32 %s102, %s130
        %s132 = sld [smem:[#allocation3 + %s131]]
        %s133 = scalar_lea.vmem %s1, %s132
        %v134 = vld [vmem:[%s133] sm:$0x1]
        %s135 = scalar_lea.vmem %s101, %s130 [#allocation4]
        %136 = vst.msk [vmem:[%s135] sm:$0x1] %vm107, %v134
        %s137 = sadd.s32 0, 5
        %s138 = sadd.s32 %s102, %s137
        %s139 = sld [smem:[#allocation3 + %s138]]
        %s140 = scalar_lea.vmem %s1, %s139
        %v141 = vld [vmem:[%s140] sm:$0x1]
        %s142 = scalar_lea.vmem %s101, %s137 [#allocation4]
        %143 = vst.msk [vmem:[%s142] sm:$0x1] %vm107, %v141
        %s144 = sadd.s32 0, 6
        %s145 = sadd.s32 %s102, %s144
        %s146 = sld [smem:[#allocation3 + %s145]]
        %s147 = scalar_lea.vmem %s1, %s146
        %v148 = vld [vmem:[%s147] sm:$0x1]
        %s149 = scalar_lea.vmem %s101, %s144 [#allocation4]
        %150 = vst.msk [vmem:[%s149] sm:$0x1] %vm107, %v148
        %s151 = sadd.s32 0, 7
        %s152 = sadd.s32 %s102, %s151
        %s153 = sld [smem:[#allocation3 + %s152]]
        %s154 = scalar_lea.vmem %s1, %s153
        %v155 = vld [vmem:[%s154] sm:$0x1]
        %s156 = scalar_lea.vmem %s101, %s151 [#allocation4]
        %157 = vst.msk [vmem:[%s156] sm:$0x1] %vm107, %v155
        %v158 = vld [vmem:[%s101] sm:$0xff]
        %v159 = vmul.f32 %v158, 5.656854
        %vm160 = vcmask 261120
        %161 = vst.msk [vmem:[%s101] sm:$0xff] %vm160, %v159
        %s162 = sand.u32 %s51, 1
        %s163 = scalar_lea.sflag [#allocation5], %s162
        %s164 = sand.u32 %s51, 1
        %s165 = smul.addr %s164, 8
        %s166 = scalar_lea.vmem [#allocation4], %s165
        // Predicated region
        $region25: #{tpu_custom_call.1} parent=23 // pred_check
          %p167 = pneg %p61
        $region26: #{tpu_custom_call.1} parent=23 // pred_check_branch
          %169 = sbr.rel (%p167) target = $region28
        $region27: #{tpu_custom_call.1} parent=23 // pred_region
          %s171 = ssub.s32 128, 128
          %172 = vsyncadd %s163, %s171
          %s173 = smul.addr %s22, 128
          %s174 = scalar_lea.hbm %s2, %s173
          %s176 = sshll.u32 %s166, 4
          %s177 = int_to_ptr.vmem [resolvable:$true] %s176
          %179 = dma.vmem_to_hbm [thread:$0]  %s177, 128, %s174, %s163
        $region28: #{tpu_custom_call.1} parent=23 // pred_fallthru
          _
      $region24: #{tpu_custom_call.1} parent=5 // pred_fallthru
        _
      %p180 = scmp.le.s32.totalorder 2, %s17
      // Predicated region
      $region29: #{tpu_custom_call.1} parent=5 // pred_check
        %p181 = pneg %p180
      $region30: #{tpu_custom_call.1} parent=5 // pred_check_branch
        %183 = sbr.rel (%p181) target = $region32
      $region31: #{tpu_custom_call.1} parent=5 // pred_region
        %s184 = ssub.s32 %s17, 2
        // Predicated region
        $region33: #{tpu_custom_call.1} parent=31 // pred_check
          %p185 = pneg %p67
        $region34: #{tpu_custom_call.1} parent=31 // pred_check_branch
          %187 = sbr.rel (%p185) target = $region36
        $region35: #{tpu_custom_call.1} parent=31 // pred_region
          %s188 = sand.u32 %s52, 1
          %s189 = scalar_lea.sflag [#allocation5], %s188
          %s190 = sand.u32 %s52, 1
          %s191 = smul.addr %s190, 8
          %s192 = scalar_lea.vmem [#allocation4], %s191
          %193 = dma.done %s189, 128
        $region36: #{tpu_custom_call.1} parent=31 // pred_fallthru
          _
      $region32: #{tpu_custom_call.1} parent=5 // pred_fallthru
        _
    $region6: #{tpu_custom_call.1} parent=1 // loop_footer
      %s21 = sadd.s32 1, %s17
    $region7: #{tpu_custom_call.1} parent=1 // loop_footer_branch
      %16 = sbr.rel target = $region3
    $region8: #{tpu_custom_call.1} parent=1 // loop_exit
      _
    %194 = vsyncpa [#allocation5], 1
    %s195 = scalar_lea.sflag [#allocation5], 1
    %196 = vsyncpa %s195, 1

</llo_original>
